<compile_context>
chip_gen: v7x
topology: tpu7x:2x2x1
jax: 0.10.0
libtpu: 0.0.40
codegen_flags: <defaults>
</compile_context>

<pallas_src>
import functools

import jax
import jax.numpy as jnp
from jax.experimental import pallas as pl
from jax.experimental.pallas import tpu as pltpu


def poscnn_kernel(x_ref, wcat_ref, b_ref, fcw_ref, fcb_ref, o_ref, *, seq_len):
    # x_ref:    (M, C) = (tb*L, C) channels-last rows; every block starts at a
    #           sample boundary (M = tb * seq_len).
    # wcat_ref: (3C, F) bf16 concatenated conv taps [W_prev; W_center; W_next].
    # b_ref:    (1, F)  f32 conv bias.
    # fcw_ref:  (F, O)  bf16 fc weight (transposed), pre-scaled by 1/L.
    # fcb_ref:  (1, O)  f32 fc bias + folded position-encoding contribution.
    # o_ref:    (TB, O)
    M, _ = x_ref.shape
    F = wcat_ref.shape[1]
    L = seq_len
    TB = M // L

    x = x_ref[...]                                            # (M, C)

    # Row position inside each length-L sample.  Blocks are whole samples, so
    # a plain iota-mod is correct for every grid step.
    pos = jax.lax.broadcasted_iota(jnp.int32, (M, 1), 0) % L

    # Conv1d(kernel_size=3, padding=1), 'same':  the +/-1 row shifts are XLU
    # sublane rolls; rows that wrapped across a sample boundary are exactly
    # the conv's zero padding, so zero them with the edge masks.
    x_prev = jnp.where(pos == 0, 0.0, pltpu.roll(x, shift=1, axis=0))
    x_next = jnp.where(pos == L - 1, 0.0, pltpu.roll(x, shift=M - 1, axis=0))

    # Fuse the three tap matmuls into one K=3C matmul (1 MXU push/pop instead
    # of 3, no extra (M, F) f32 accumulator adds).  Cast once to bf16.
    xcat = jnp.concatenate([x_prev, x, x_next], axis=1).astype(jnp.bfloat16)

    acc = jnp.dot(xcat, wcat_ref[...], preferred_element_type=jnp.float32)
    acc += b_ref[...]                                         # conv bias
    acc = jnp.maximum(acc, 0.0)                               # ReLU
    # (position encoding is folded into fcb in the wrapper)

    # AdaptiveAvgPool1d(1): per-sample sum over L (the 1/L lives in fcw).
    pooled = jnp.sum(acc.reshape(TB, L, F), axis=1)           # (TB, F) f32

    out = jnp.dot(pooled.astype(jnp.bfloat16), fcw_ref[...],
                  preferred_element_type=jnp.float32)
    out += fcb_ref[...]
    o_ref[...] = out.astype(o_ref.dtype)


def _vmem_limit_bytes():
    """Generation-aware VMEM limit: <=48 MiB on v7x (64 MiB/TC), 96 MiB on
    v5e/v6e (128 MiB).  Falls back to the conservative setting off-TPU."""
    cap = 64 * 1024 * 1024
    try:
        info_fn = getattr(pltpu, "get_tpu_info", None)
        if info_fn is not None:
            cap = int(getattr(info_fn(), "vmem_capacity_bytes", cap) or cap)
    except Exception:
        pass
    if cap <= 64 * 1024 * 1024:
        return 48 * 1024 * 1024
    return 96 * 1024 * 1024


def _pick_batch_tile(B, L, C, F, x_itemsize, vmem_budget_bytes):
    """Largest batch tile under the VMEM budget, counting the physical lane
    padding to 128, and capped so the parallel grid has >=2 steps when the
    batch allows it (keeps both v7x TensorCores busy)."""
    LANE = 128

    def row_bytes(cols, nbytes):
        return ((cols + LANE - 1) // LANE) * LANE * nbytes

    per_sample = L * (
        2 * row_bytes(C, x_itemsize)       # double-buffered x input block
        + 2 * row_bytes(C, x_itemsize)     # rolled/masked x_prev, x_next
        + row_bytes(3 * C, x_itemsize)     # concatenated conv operand
        + row_bytes(3 * C, 2)              # bf16 operand handed to the MXU
        + 2 * row_bytes(F, 4)              # f32 conv accumulator + live temp
    ) + 8 * row_bytes(F, 4)                # pooled accumulator
    tb = max(1, int(vmem_budget_bytes) // per_sample)

    if tb >= B:
        # Whole batch fits in one step.  Prefer >=2 grid steps (v7x has two
        # TensorCores) as long as each step still has a healthy row count.
        half = (B + 1) // 2
        if B >= 16 and half * L >= 256:
            tb = ((half + 7) // 8) * 8
        else:
            tb = B
    if tb < B:
        # Blocked sublane dims (tb*L rows in, tb rows out) must stay 8-aligned.
        tb = max(8, (tb // 8) * 8)
        tb = min(tb, B)
    return tb


@functools.partial(jax.jit, static_argnames=("block_b",))
def poscnn_forward(x, conv_w, conv_b, pos_enc, fc_w, fc_b, *, block_b=None):
    """x: (B, L, C_in) -- the module's input layout before its permute."""
    B, L, C = x.shape
    F = conv_w.shape[0]            # hidden width (64 in the module)
    O = fc_w.shape[0]

    # ---- parameter glue (tiny, once per call) ----
    # conv_w (F, C, 3): tap k pairs with x[l-1+k]; build (3C, F) rows ordered
    # [W_prev; W_center; W_next] to match xcat = [x_prev | x | x_next].
    wcat = jnp.transpose(conv_w, (2, 1, 0)).reshape(3 * C, F).astype(jnp.bfloat16)
    b = conv_b.reshape(1, F).astype(jnp.float32)

    fcw_f32 = jnp.transpose(fc_w, (1, 0)).astype(jnp.float32)           # (F, O)
    fcb = fc_b.astype(jnp.float32)
    if pos_enc is not None:
        # pe is added after the ReLU; pooling + FC are linear, so its whole
        # contribution is mean_L(pe) @ fc_w.T -> fold it into the FC bias.
        pe_mean = jnp.mean(pos_enc[:, :L].astype(jnp.float32), axis=1)   # (F,)
        fcb = fcb + pe_mean @ fcw_f32
    fcb = fcb.reshape(1, O)
    # Fold the 1/L pooling scale into the FC weight and ship it as bf16.
    fcw = (fcw_f32 * (1.0 / L)).astype(jnp.bfloat16)

    # Flatten to (B*L, C): a pure leading-dim merge (free) so the kernel block
    # is 2-D and never needs an in-kernel relayout.
    x2d = x.reshape(B * L, C)

    vmem_limit = _vmem_limit_bytes()
    tb = block_b if block_b is not None else _pick_batch_tile(
        B, L, C, F, x.dtype.itemsize, (3 * vmem_limit) // 4)
    grid = (pl.cdiv(B, tb),)

    # Note: if B % tb != 0, the padded last x block reads undefined rows; the
    # edge masks keep them from leaking across sample boundaries and their
    # outputs land only in discarded (out-of-bounds) output rows.
    kernel = functools.partial(poscnn_kernel, seq_len=L)

    return pl.pallas_call(
        kernel,
        out_shape=jax.ShapeDtypeStruct((B, O), x.dtype),
        grid=grid,
        in_specs=[
            pl.BlockSpec((tb * L, C), lambda i: (i, 0)),   # batch-tiled rows
            pl.BlockSpec((3 * C, F), lambda i: (0, 0)),    # VMEM-resident
            pl.BlockSpec((1, F), lambda i: (0, 0)),
            pl.BlockSpec((F, O), lambda i: (0, 0)),
            pl.BlockSpec((1, O), lambda i: (0, 0)),
        ],
        out_specs=pl.BlockSpec((tb, O), lambda i: (i, 0)),
        compiler_params=pltpu.CompilerParams(
            dimension_semantics=("parallel",),
            vmem_limit_bytes=vmem_limit,
        ),
    )(x2d, wcat, b, fcw, fcb)


if __name__ == "__main__":
    key = jax.random.PRNGKey(0)
    kx, kw, kb, kp, kfw, kfb = jax.random.split(key, 6)

    # Small shapes consistent with the module (seq_len <= input_size so the
    # position-encoding slice is valid).
    B, L, C_in, O = 2, 8, 16, 8
    x = jax.random.normal(kx, (B, L, C_in), dtype=jnp.float32)

    # Deterministic synthetic parameters (module shapes from __init__).
    conv_w = jax.random.normal(kw, (64, C_in, 3), dtype=jnp.float32) * 0.1
    conv_b = jax.random.normal(kb, (64,), dtype=jnp.float32) * 0.1
    # Module inits position_encoding to zeros; use small randoms so the folded
    # add-path is actually exercised (it is a learnable parameter anyway).
    pos_enc = jax.random.normal(kp, (64, C_in), dtype=jnp.float32) * 0.1
    fc_w = jax.random.normal(kfw, (O, 64), dtype=jnp.float32) * 0.1
    fc_b = jax.random.normal(kfb, (O,), dtype=jnp.float32) * 0.1

    out = poscnn_forward(x, conv_w, conv_b, pos_enc, fc_w, fc_b)
    out = jax.block_until_ready(out)

    # Pure-JAX f32 reference mirroring the PyTorch forward (NCW conv).
    xt = jnp.transpose(x, (0, 2, 1))                          # (B, C_in, L)
    y = jax.lax.conv_general_dilated(
        xt, conv_w, window_strides=(1,), padding=((1, 1),),
        dimension_numbers=("NCH", "OIH", "NCH"))
    y = y + conv_b[None, :, None]
    y = jnp.maximum(y, 0.0)
    y = y + pos_enc[:, :L][None, :, :]
    pooled = jnp.mean(y, axis=2)                              # (B, 64)
    ref = pooled @ fc_w.T + fc_b[None, :]

    assert out.shape == (B, O)
    # bf16 matmul operands inside the kernel -> looser tolerance vs f32 ref.
    assert jnp.allclose(out, ref, atol=3e-2, rtol=3e-2), (out, ref)
    print("KERNEL_OK")
</pallas_src>

<mosaic_0001>
module attributes {stable_mosaic.version = 11 : i64} {
  func.func @poscnn_kernel(%arg0: i32, %arg1: memref<16x16xf32, #tpu.memory_space<vmem>>, %arg2: memref<48x64xbf16, #tpu.memory_space<vmem>>, %arg3: memref<1x64xf32, #tpu.memory_space<vmem>>, %arg4: memref<64x8xbf16, #tpu.memory_space<vmem>>, %arg5: memref<1x8xf32, #tpu.memory_space<vmem>>, %arg6: memref<2x8xf32, #tpu.memory_space<vmem>>) attributes {dimension_semantics = [#tpu.dimension_semantics<parallel>], iteration_bounds = array<i64: 1>, scalar_prefetch = 0 : i64, scratch_operands = 0 : i64, tpu.core_type = #tpu.core_type<tc>, window_params = [{transform_indices = @transform_0, window_bounds = array<i64: 16, 16>}, {pipeline_mode = #tpu.pipeline_mode<synchronous>, transform_indices = @transform_1, window_bounds = array<i64: 48, 64>}, {pipeline_mode = #tpu.pipeline_mode<synchronous>, transform_indices = @transform_2, window_bounds = array<i64: 1, 64>}, {pipeline_mode = #tpu.pipeline_mode<synchronous>, transform_indices = @transform_3, window_bounds = array<i64: 64, 8>}, {pipeline_mode = #tpu.pipeline_mode<synchronous>, transform_indices = @transform_4, window_bounds = array<i64: 1, 8>}, {transform_indices = @transform_5, window_bounds = array<i64: 2, 8>}]} {
    %c0 = arith.constant 0 : index
    %c0_0 = arith.constant 0 : index
    %0 = vector.load %arg1[%c0, %c0_0] : memref<16x16xf32, #tpu.memory_space<vmem>>, vector<16x16xf32>
    %1 = tpu.iota {dimensions = array<i32: 0>} : vector<16x1xi32>
    %c8_i32 = arith.constant 8 : i32
    %c0_i32 = arith.constant 0 : i32
    %2 = arith.cmpi eq, %c8_i32, %c0_i32 : i32
    %c1_i32 = arith.constant 1 : i32
    %3 = arith.select %2, %c1_i32, %c8_i32 : i32
    %4 = vector.broadcast %3 : i32 to vector<16x1xi32>
    %5 = arith.remsi %1, %4 : vector<16x1xi32>
    %c0_i32_1 = arith.constant 0 : i32
    %6 = vector.broadcast %c0_i32_1 : i32 to vector<16x1xi32>
    %7 = arith.cmpi ne, %5, %6 : vector<16x1xi32>
    %c0_i32_2 = arith.constant 0 : i32
    %8 = vector.broadcast %c0_i32_2 : i32 to vector<16x1xi32>
    %9 = arith.cmpi slt, %5, %8 : vector<16x1xi32>
    %c0_i32_3 = arith.constant 0 : i32
    %10 = arith.cmpi slt, %3, %c0_i32_3 : i32
    %11 = vector.broadcast %10 : i1 to vector<16x1xi1>
    %12 = vector.broadcast %11 : vector<16x1xi1> to vector<16x1xi1>
    %13 = arith.xori %9, %12 : vector<16x1xi1>
    %14 = arith.andi %13, %7 : vector<16x1xi1>
    %15 = vector.broadcast %3 : i32 to vector<16x1xi32>
    %16 = arith.addi %5, %15 : vector<16x1xi32>
    %17 = arith.select %14, %16, %5 : vector<16x1xi1>, vector<16x1xi32>
    %c0_i32_4 = arith.constant 0 : i32
    %18 = vector.broadcast %c0_i32_4 : i32 to vector<16x1xi32>
    %19 = arith.cmpi eq, %17, %18 : vector<16x1xi32>
    %c1_i32_5 = arith.constant 1 : i32
    %20 = tpu.dynamic_rotate %0 by %c1_i32_5 dim 0 : vector<16x16xf32>, i32 -> vector<16x16xf32>
    %cst = arith.constant 0.000000e+00 : f32
    %21 = vector.shape_cast %19 : vector<16x1xi1> to vector<16x1xi1>
    %22 = vector.broadcast %21 : vector<16x1xi1> to vector<16x16xi1>
    %23 = vector.broadcast %cst : f32 to vector<16x16xf32>
    %24 = arith.select %22, %23, %20 : vector<16x16xi1>, vector<16x16xf32>
    %c7_i32 = arith.constant 7 : i32
    %25 = vector.broadcast %c7_i32 : i32 to vector<16x1xi32>
    %26 = arith.cmpi eq, %17, %25 : vector<16x1xi32>
    %c15_i32 = arith.constant 15 : i32
    %27 = tpu.dynamic_rotate %0 by %c15_i32 dim 0 : vector<16x16xf32>, i32 -> vector<16x16xf32>
    %cst_6 = arith.constant 0.000000e+00 : f32
    %28 = vector.shape_cast %26 : vector<16x1xi1> to vector<16x1xi1>
    %29 = vector.broadcast %28 : vector<16x1xi1> to vector<16x16xi1>
    %30 = vector.broadcast %cst_6 : f32 to vector<16x16xf32>
    %31 = arith.select %29, %30, %27 : vector<16x16xi1>, vector<16x16xf32>
    %32 = tpu.concatenate %24, %0, %31 in 1 : vector<16x16xf32>, vector<16x16xf32>, vector<16x16xf32> -> vector<16x48xf32>
    %33 = arith.truncf %32 : vector<16x48xf32> to vector<16x48xbf16>
    %c0_7 = arith.constant 0 : index
    %c0_8 = arith.constant 0 : index
    %34 = vector.load %arg2[%c0_7, %c0_8] : memref<48x64xbf16, #tpu.memory_space<vmem>>, vector<48x64xbf16>
    %cst_9 = arith.constant dense<0.000000e+00> : vector<16x64xf32>
    %35 = tpu.matmul %33, %34, %cst_9 {dimension_numbers = #tpu.dot_dimension_numbers<[1], [0], [0], [1], [0, 0, 1, 1], [], []>} : vector<16x48xbf16>, vector<48x64xbf16>, vector<16x64xf32> -> vector<16x64xf32>
    %c0_10 = arith.constant 0 : index
    %c0_11 = arith.constant 0 : index
    %36 = vector.load %arg3[%c0_10, %c0_11] : memref<1x64xf32, #tpu.memory_space<vmem>>, vector<1x64xf32>
    %37 = vector.broadcast %36 : vector<1x64xf32> to vector<16x64xf32>
    %38 = arith.addf %35, %37 : vector<16x64xf32>
    %cst_12 = arith.constant 0.000000e+00 : f32
    %39 = vector.broadcast %cst_12 : f32 to vector<16x64xf32>
    %40 = arith.maximumf %38, %39 : vector<16x64xf32>
    %41 = vector.shape_cast %40 : vector<16x64xf32> to vector<2x8x64xf32>
    %cst_13 = arith.constant dense<0.000000e+00> : vector<2x64xf32>
    %42 = vector.multi_reduction <add>, %41, %cst_13 [1] : vector<2x8x64xf32> to vector<2x64xf32>
    %43 = arith.truncf %42 : vector<2x64xf32> to vector<2x64xbf16>
    %c0_14 = arith.constant 0 : index
    %c0_15 = arith.constant 0 : index
    %44 = vector.load %arg4[%c0_14, %c0_15] : memref<64x8xbf16, #tpu.memory_space<vmem>>, vector<64x8xbf16>
    %cst_16 = arith.constant dense<0.000000e+00> : vector<2x8xf32>
    %45 = tpu.matmul %43, %44, %cst_16 {dimension_numbers = #tpu.dot_dimension_numbers<[1], [0], [0], [1], [0, 0, 1, 1], [], []>} : vector<2x64xbf16>, vector<64x8xbf16>, vector<2x8xf32> -> vector<2x8xf32>
    %c0_17 = arith.constant 0 : index
    %c0_18 = arith.constant 0 : index
    %46 = vector.load %arg5[%c0_17, %c0_18] : memref<1x8xf32, #tpu.memory_space<vmem>>, vector<1x8xf32>
    %47 = vector.broadcast %46 : vector<1x8xf32> to vector<2x8xf32>
    %48 = arith.addf %45, %47 : vector<2x8xf32>
    %c0_19 = arith.constant 0 : index
    %c0_20 = arith.constant 0 : index
    %49 = vector.load %arg6[%c0_19, %c0_20] : memref<2x8xf32, #tpu.memory_space<vmem>>, vector<2x8xf32>
    tpu.vector_store %arg6[%c0_19, %c0_20], %48 {strides = array<i32>} : memref<2x8xf32, #tpu.memory_space<vmem>>, vector<2x8xf32>,
    return
  }
  func.func @transform_0(%arg0: i32) -> (i32, i32) {
    %c0_i32 = arith.constant 0 : i32
    %c0_i32_0 = arith.constant 0 : i32
    return %arg0, %c0_i32 : i32, i32
  }
  func.func @transform_1(%arg0: i32) -> (i32, i32) {
    %c0_i32 = arith.constant 0 : i32
    %c0_i32_0 = arith.constant 0 : i32
    %c0_i32_1 = arith.constant 0 : i32
    return %c0_i32, %c0_i32_0 : i32, i32
  }
  func.func @transform_2(%arg0: i32) -> (i32, i32) {
    %c0_i32 = arith.constant 0 : i32
    %c0_i32_0 = arith.constant 0 : i32
    %c0_i32_1 = arith.constant 0 : i32
    return %c0_i32, %c0_i32_0 : i32, i32
  }
  func.func @transform_3(%arg0: i32) -> (i32, i32) {
    %c0_i32 = arith.constant 0 : i32
    %c0_i32_0 = arith.constant 0 : i32
    %c0_i32_1 = arith.constant 0 : i32
    return %c0_i32, %c0_i32_0 : i32, i32
  }
  func.func @transform_4(%arg0: i32) -> (i32, i32) {
    %c0_i32 = arith.constant 0 : i32
    %c0_i32_0 = arith.constant 0 : i32
    %c0_i32_1 = arith.constant 0 : i32
    return %c0_i32, %c0_i32_0 : i32, i32
  }
  func.func @transform_5(%arg0: i32) -> (i32, i32) {
    %c0_i32 = arith.constant 0 : i32
    %c0_i32_0 = arith.constant 0 : i32
    return %arg0, %c0_i32 : i32, i32
  }
}

</mosaic_0001>

<llo_original>
// kernel: poscnn_forward.1
$region0: #{poscnn_forward.1}
  #allocation0 [shape = 'u32[]', space=smem, size = 0x4, offset = 0x4, fixed_abs, tag = 'smem constant byte address 0x4 - core index']
  #allocation1 [shape = 'u32[144,128]{1,0:T(1,128)}', space=vmem, size = 0x12000, scoped, tag = 'internal scratch']
  %s0 = inlined_call_operand.vmem [shape: f32[16,16], index: 0, kind: input, shape index: {}]
  %s1 = inlined_call_operand.vmem [shape: bf16[48,64], index: 1, kind: input, shape index: {}]
  %s2 = inlined_call_operand.vmem [shape: f32[1,64], index: 2, kind: input, shape index: {}]
  %s3 = inlined_call_operand.vmem [shape: bf16[64,8], index: 3, kind: input, shape index: {}]
  %s4 = inlined_call_operand.vmem [shape: f32[1,8], index: 4, kind: input, shape index: {}]
  %s5 = inlined_call_operand.hbm [shape: f32[2,8], index: 5, kind: output, shape index: {}]
  %s6 = sld [smem:[#allocation0]]
  $region30: #{poscnn_forward.1} parent=0
    _
  %s8 = ssub.s32 1, %s6
  %s9 = scalar_select 0, %s8, %s6
  $region1: #{poscnn_forward.1} parent=0
    #allocation2 [shape = 'u8[1024]{0}', space=vmem, size = 0x400, scoped, tag = 'output window, operand 0, single buffered']
    #allocation3 [shape = 's32[1]{0}', space=sflag, size = 0x4, scoped, tag = 'scoped memory for poscnn_forward.1']
    %10 = vsyncpa [#allocation3], 0
    // Predicated region
    $region2: #{poscnn_forward.1} parent=1 // pred_check
      _
    $region3: #{poscnn_forward.1} parent=1 // pred_check_branch
      %12 = sbr.rel (0) target = $region5
    $region4: #{poscnn_forward.1} parent=1 // pred_region
      _
    $region5: #{poscnn_forward.1} parent=1 // pred_fallthru
      _
    // Predicated region
    $region6: #{poscnn_forward.1} parent=1 // pred_check
      _
    $region7: #{poscnn_forward.1} parent=1 // pred_check_branch
      %14 = sbr.rel (0) target = $region9
    $region8: #{poscnn_forward.1} parent=1 // pred_region
      _
    $region9: #{poscnn_forward.1} parent=1 // pred_fallthru
      _
    // Predicated region
    $region10: #{poscnn_forward.1} parent=1 // pred_check
      _
    $region11: #{poscnn_forward.1} parent=1 // pred_check_branch
      %16 = sbr.rel (0) target = $region13
    $region12: #{poscnn_forward.1} parent=1 // pred_region
      _
    $region13: #{poscnn_forward.1} parent=1 // pred_fallthru
      _
    // Predicated region
    $region14: #{poscnn_forward.1} parent=1 // pred_check
      _
    $region15: #{poscnn_forward.1} parent=1 // pred_check_branch
      %18 = sbr.rel (0) target = $region17
    $region16: #{poscnn_forward.1} parent=1 // pred_region
      _
    $region17: #{poscnn_forward.1} parent=1 // pred_fallthru
      _
    // Predicated region
    $region18: #{poscnn_forward.1} parent=1 // pred_check
      _
    $region19: #{poscnn_forward.1} parent=1 // pred_check_branch
      %20 = sbr.rel (0) target = $region21
    $region20: #{poscnn_forward.1} parent=1 // pred_region
      _
    $region21: #{poscnn_forward.1} parent=1 // pred_fallthru
      _
    %v22 = vld [vmem:[%s0] sm:$0xff]
    %v23 = vld [vmem:[%s0 + $0x8] sm:$0xff]
    %v24 = vlaneseq
    %v25 = vshrl.u32 %v24, 7
    %v26 = vadd.s32 %v25, 8
    %vm27 = vcmp.lt.s32.totalorder %v25, 0
    %v28 = vsub.s32 0, %v25
    %v29 = vsel %vm27, %v28, %v25
    %v30 = vshrl.u32 %v29, 3
    %v31 = vand.u32 %v29, 7
    %v32 = vsub.s32 0, %v31
    %v33 = vsel %vm27, %v32, %v31
    %vm34 = vcmp.lt.s32.totalorder %v26, 0
    %v35 = vsub.s32 0, %v26
    %v36 = vsel %vm34, %v35, %v26
    %v37 = vshrl.u32 %v36, 3
    %v38 = vand.u32 %v36, 7
    %v39 = vsub.s32 0, %v38
    %v40 = vsel %vm34, %v39, %v38
    %vm41 = vcmp.ne.s32.totalorder %v33, 0
    %vm42 = vcmp.ne.s32.totalorder %v40, 0
    %vm43 = vcmp.lt.s32.totalorder %v33, 0
    %vm44 = vcmp.lt.s32.totalorder %v40, 0
    %vm45 = vmand %vm43, %vm41
    %vm46 = vmand %vm44, %vm42
    %v47 = vadd.s32 %v33, 8
    %v48 = vadd.s32 %v40, 8
    %v49 = vsel %vm45, %v47, %v33
    %v50 = vsel %vm46, %v48, %v40
    %vm51 = vcmp.eq.s32.totalorder %v49, 0
    %vm52 = vcmp.eq.s32.totalorder %v50, 0
    %v53 = vrot.slane %v22, 7
    %v54 = vrot.slane %v23, 7
    %vm55 = vcmp.lt.s32.totalorder %v25, 1
    %v56 = vsel %vm55, %v53, %v54
    %v57 = vsel %vm55, %v54, %v53
    %v58 = vsel %vm51, 1, 0
    %v59 = vsel %vm52, 1, 0
    %vm60 = vcmp.eq.s32.totalorder %v58, 1
    %vm61 = vcmp.eq.s32.totalorder %v59, 1
    %v62 = vsel %vm60, 0.0, %v57
    %v63 = vsel %vm61, 0.0, %v56
    %vm64 = vcmp.eq.s32.totalorder %v49, 7
    %vm65 = vcmp.eq.s32.totalorder %v50, 7
    %v66 = vrot.slane %v22, 1
    %v67 = vrot.slane %v23, 1
    %vm68 = vcmp.lt.s32.totalorder %v25, 7
    %v69 = vsel %vm68, %v66, %v67
    %v70 = vsel %vm68, %v67, %v66
    %v71 = vsel %vm64, 1, 0
    %v72 = vsel %vm65, 1, 0
    %vm73 = vcmp.eq.s32.totalorder %v71, 1
    %vm74 = vcmp.eq.s32.totalorder %v72, 1
    %v75 = vsel %vm73, 0.0, %v69
    %v76 = vsel %vm74, 0.0, %v70
    %79 = vrot.lane.b32.xlu0 %v22, 16
    %v80 = vpop.permute.xlu0 %79
    %81 = vrot.lane.b32.xlu0 %v23, 16
    %v82 = vpop.permute.xlu0 %81
    %87 = vrot.lane.b32.xlu0 %v75, 32
    %v88 = vpop.permute.xlu0 %87
    %89 = vrot.lane.b32.xlu0 %v76, 32
    %v90 = vpop.permute.xlu0 %89
    %vm93 = vcmask 130048
    %v94 = vsel %vm93, %v62, %v80
    %v95 = vsel %vm93, %v63, %v82
    %vm96 = vcmask 261120
    %v97 = vsel %vm96, %v94, %v88
    %v98 = vsel %vm96, %v95, %v90
    %v99 = vpack.c.bf16 %v98, %v97
    %v100 = vld [vmem:[%s1] sm:$0xf]
    %v101 = vld [vmem:[%s1 + $0x4] sm:$0xf]
    %v102 = vld [vmem:[%s1 + $0x8] sm:$0xf]
    %v103 = vld [vmem:[%s1 + $0xc] sm:$0xf]
    %v104 = vld [vmem:[%s1 + $0x10] sm:$0xf]
    %v105 = vld [vmem:[%s1 + $0x14] sm:$0xf]
    %v106 = vld [vmem:[%s2] sm:$0x1]
    %v108 = vlaneseq
    %v109 = vshrl.u32 %v108, 7
    %v110 = vsub.s32 0, %v109
    %v111 = vrot.slane %v106, %v110
    %v119 = vunpack.c.l.b16 %v100
    %v120 = vunpack.c.l.b16 %v101
    %v121 = vunpack.c.l.b16 %v102
    %v122 = vunpack.c.l.b16 %v103
    %v123 = vunpack.c.l.b16 %v104
    %v124 = vunpack.c.l.b16 %v105
    %v125 = vpack.c.b16 %v120, %v119
    %v126 = vpack.c.b16 %v122, %v121
    %v127 = vpack.c.b16 %v124, %v123
    %vm131 = vcmask 392192
    %v133 = vsel %vm131, %v99, 0
    %135 = vmatprep.subr.bf16.mxu0 0
    %136 = vmatpush1.bf16.msra.mxu0 %v125
    %137 = vmatprep.subr.bf16.mxu0 0
    %138 = vmatpush1.bf16.msra.mxu0 %v126
    %139 = vmatprep.subr.bf16.mxu0 0
    %140 = vmatpush1.bf16.msra.mxu0 %v127
    %141 = vmatprep.subr.bf16.mxu0 0
    %142 = vmatpush1.bf16.msra.mxu0 0
    %143 = vmatprep.subr.bf16.mxu0 0
    %144 = vmatpush1.bf16.msra.mxu0 0
    %145 = vmatprep.subr.bf16.mxu0 0
    %146 = vmatpush1.bf16.msra.mxu0 0
    %147 = vmatprep.subr.bf16.mxu0 0
    %148 = vmatpush1.bf16.msra.mxu0 0
    %149 = vmatprep.subr.bf16.mxu0 0
    %150 = vmatpush1.bf16.msra.mxu0 0
    %151 = vmatprep.subr.bf16.mxu0 0
    %152 = vmatpush1.bf16.msra.mxu0 0
    %153 = vmatprep.subr.bf16.mxu0 0
    %154 = vmatpush1.bf16.msra.mxu0 0
    %155 = vmatprep.subr.bf16.mxu0 0
    %156 = vmatpush1.bf16.msra.mxu0 0
    %157 = vmatprep.subr.bf16.mxu0 0
    %158 = vmatpush1.bf16.msra.mxu0 0
    %159 = vmatprep.subr.bf16.mxu0 0
    %160 = vmatpush1.bf16.msra.mxu0 0
    %161 = vmatprep.subr.bf16.mxu0 0
    %162 = vmatpush1.bf16.msra.mxu0 0
    %163 = vmatprep.subr.bf16.mxu0 0
    %164 = vmatpush1.bf16.msra.mxu0 0
    %165 = vmatprep.subr.bf16.mxu0 0
    %166 = vmatpush1.bf16.msra.mxu0 0
    %167 = vmatprep.mubr.bf16.mxu0 0
    %168 = vmatmul.mubr.bf16.gmra.mrb[0].mxu0 %v133
    %v169 = vpop.f32.mrb[0].mxu0
    %v170 = vadd.f32 %v111, %v169
    %v171 = vpop.f32.mrb[0].mxu0
    %v172 = vpop.f32.mrb[0].mxu0
    %v173 = vadd.f32 %v111, %v172
    %v174 = vpop.f32.mrb[0].mxu0
    %175 = vdwg.mxu0
    %v176 = vmax.f32 %v170, 0.0
    %v177 = vmax.f32 %v173, 0.0
    %vm178 = vcmask 523264
    %v179 = vsel %vm178, %v176, 0.0
    %v180 = vrot.slane %v179, 4
    %v181 = vadd.f32 %v179, %v180
    %v182 = vrot.slane %v181, 2
    %v183 = vadd.f32 %v181, %v182
    %v184 = vrot.slane %v183, 1
    %v185 = vadd.f32 %v183, %v184
    %v186 = vsel %vm178, %v177, 0.0
    %v187 = vrot.slane %v186, 4
    %v188 = vadd.f32 %v186, %v187
    %v189 = vrot.slane %v188, 2
    %v190 = vadd.f32 %v188, %v189
    %v191 = vrot.slane %v190, 1
    %v192 = vadd.f32 %v190, %v191
    %v193 = vpack.c.bf16 %v185, %v185
    %v194 = vpack.c.bf16 %v192, %v192
    %v195 = vld [vmem:[%s3] sm:$0xf]
    %v196 = vld [vmem:[%s3 + $0x4] sm:$0xf]
    %v197 = vld [vmem:[%s3 + $0x8] sm:$0xf]
    %v198 = vld [vmem:[%s3 + $0xc] sm:$0xf]
    %v199 = vld [vmem:[%s3 + $0x10] sm:$0xf]
    %v200 = vld [vmem:[%s3 + $0x14] sm:$0xf]
    %v201 = vld [vmem:[%s3 + $0x18] sm:$0xf]
    %v202 = vld [vmem:[%s3 + $0x1c] sm:$0xf]
    %v203 = vld [vmem:[%s4] sm:$0x1]
    %v205 = vlaneseq
    %v206 = vshrl.u32 %v205, 7
    %v207 = vsub.s32 0, %v206
    %v208 = vrot.slane %v203, %v207
    %v212 = vunpack.c.l.b16 %v193
    %v213 = vunpack.c.l.b16 %v194
    %vm214 = vcmask 1041409
    %v215 = vsel %vm214, %v213, %v212
    %v216 = vpack.c.b16 %v215, %v215
    %v225 = vunpack.c.l.b16 %v195
    %v226 = vunpack.c.l.b16 %v196
    %v227 = vunpack.c.l.b16 %v197
    %v228 = vunpack.c.l.b16 %v198
    %v229 = vunpack.c.l.b16 %v199
    %v230 = vunpack.c.l.b16 %v200
    %v231 = vunpack.c.l.b16 %v201
    %v232 = vunpack.c.l.b16 %v202
    %v233 = vpack.c.b16 %v226, %v225
    %v234 = vpack.c.b16 %v228, %v227
    %v235 = vpack.c.b16 %v230, %v229
    %v236 = vpack.c.b16 %v232, %v231
    %v242 = vsel %vm178, %v216, 0
    %244 = vmatprep.subr.bf16.mxu0 0
    %245 = vmatpush1.bf16.msra.mxu0 %v233
    %246 = vmatprep.subr.bf16.mxu0 0
    %247 = vmatpush1.bf16.msra.mxu0 %v234
    %248 = vmatprep.subr.bf16.mxu0 0
    %249 = vmatpush1.bf16.msra.mxu0 %v235
    %250 = vmatprep.subr.bf16.mxu0 0
    %251 = vmatpush1.bf16.msra.mxu0 %v236
    %252 = vmatprep.subr.bf16.mxu0 0
    %253 = vmatpush1.bf16.msra.mxu0 0
    %254 = vmatprep.subr.bf16.mxu0 0
    %255 = vmatpush1.bf16.msra.mxu0 0
    %256 = vmatprep.subr.bf16.mxu0 0
    %257 = vmatpush1.bf16.msra.mxu0 0
    %258 = vmatprep.subr.bf16.mxu0 0
    %259 = vmatpush1.bf16.msra.mxu0 0
    %260 = vmatprep.subr.bf16.mxu0 0
    %261 = vmatpush1.bf16.msra.mxu0 0
    %262 = vmatprep.subr.bf16.mxu0 0
    %263 = vmatpush1.bf16.msra.mxu0 0
    %264 = vmatprep.subr.bf16.mxu0 0
    %265 = vmatpush1.bf16.msra.mxu0 0
    %266 = vmatprep.subr.bf16.mxu0 0
    %267 = vmatpush1.bf16.msra.mxu0 0
    %268 = vmatprep.subr.bf16.mxu0 0
    %269 = vmatpush1.bf16.msra.mxu0 0
    %270 = vmatprep.subr.bf16.mxu0 0
    %271 = vmatpush1.bf16.msra.mxu0 0
    %272 = vmatprep.subr.bf16.mxu0 0
    %273 = vmatpush1.bf16.msra.mxu0 0
    %274 = vmatprep.subr.bf16.mxu0 0
    %275 = vmatpush1.bf16.msra.mxu0 0
    %276 = vmatprep.mubr.bf16.mxu0 0
    %277 = vmatmul.mubr.bf16.gmra.mrb[0].mxu0 %v242
    %v278 = vpop.f32.mrb[0].mxu0
    %v279 = vadd.f32 %v208, %v278
    %v280 = vpop.f32.mrb[0].mxu0
    %v281 = vpop.f32.mrb[0].mxu0
    %v282 = vpop.f32.mrb[0].mxu0
    %283 = vdwg.mxu0
    %vm284 = vcmask 58368
    %285 = vst.msk [vmem:[#allocation2] sm:$0x3] %vm284, %v279
    // Predicated region
    $region22: #{poscnn_forward.1} parent=1 // pred_check
      _
    $region23: #{poscnn_forward.1} parent=1 // pred_check_branch
      %287 = sbr.rel (0) target = $region25
    $region24: #{poscnn_forward.1} parent=1 // pred_region
      %s289 = ssub.s32 32, 32
      %290 = vsyncadd [#allocation3], %s289
      %s292 = sshll.u32 [#allocation2], 4
      %s293 = int_to_ptr.vmem [resolvable:$true] %s292
      %295 = dma.vmem_to_hbm [thread:$0]  %s293, 32, %s5, [#allocation3]
    $region25: #{poscnn_forward.1} parent=1 // pred_fallthru
      _
    // Predicated region
    $region26: #{poscnn_forward.1} parent=1 // pred_check
      _
    $region27: #{poscnn_forward.1} parent=1 // pred_check_branch
      %297 = sbr.rel (0) target = $region29
    $region28: #{poscnn_forward.1} parent=1 // pred_region
      %298 = dma.done [#allocation3], 32
    $region29: #{poscnn_forward.1} parent=1 // pred_fallthru
      _
    %299 = vsyncpa [#allocation3], 1

</llo_original>
